<compile_context>
chip_gen: v6e
topology: v6e:2x2x1
jax: 0.10.0
libtpu: 0.0.40
codegen_flags: <defaults>
</compile_context>

<pallas_src>
import jax
import jax.numpy as jnp
from jax.experimental import pallas as pl
from jax.experimental.pallas import tpu as pltpu


MFCC_DIM = 40
TEXT_DIM = 768
HIDDEN_DIM = 256
HALF_DIM = HIDDEN_DIM // 2            # 128
OUT_DIM = 2


# ----------------------------------------------------------------------------
# Kernel: one batch tile per grid step, weights resident in VMEM.
# ----------------------------------------------------------------------------
def _audio_kernel(mfcc_ref, text_ref, w_mfcc_ref, w_text_ref, b_in_ref,
                  w_h_ref, b_h_ref, w_o_ref, b_o_ref, o_ref):
    # First layer: (mfcc_proj(m) + text_proj(t)) / 2, with the 0.5 folded
    # into the bf16 weights and the combined bias.  Inputs are cast to bf16
    # once (MXU inputs); accumulation is f32.
    combined = jnp.dot(mfcc_ref[...].astype(jnp.bfloat16), w_mfcc_ref[...],
                       preferred_element_type=jnp.float32)
    combined = combined + jnp.dot(text_ref[...].astype(jnp.bfloat16),
                                  w_text_ref[...],
                                  preferred_element_type=jnp.float32)
    combined = combined + b_in_ref[...]

    # Hidden layer: Linear -> ReLU, kept fully in f32 (tiny matmul; avoids a
    # second bf16 rounding of activations).
    h = jnp.dot(combined, w_h_ref[...], preferred_element_type=jnp.float32)
    h = jnp.maximum(h + b_h_ref[...], 0.0)

    # Output layer: Linear -> Sigmoid -> *10, f32 epilogue, 2-lane store.
    logits = jnp.dot(h, w_o_ref[...], preferred_element_type=jnp.float32)
    logits = logits + b_o_ref[...]
    o_ref[...] = (jax.nn.sigmoid(logits) * 10.0).astype(o_ref.dtype)


# ----------------------------------------------------------------------------
# Parameter preparation: fold the 0.5 average, cast first-layer weights bf16.
# ----------------------------------------------------------------------------
def prepare_params(params):
    return {
        "w_mfcc": (params["w_mfcc"] * 0.5).astype(jnp.bfloat16),
        "w_text": (params["w_text"] * 0.5).astype(jnp.bfloat16),
        "b_in": ((params["b_mfcc"] + params["b_text"]) * 0.5).astype(jnp.float32),
        "w_h": params["w_h"].astype(jnp.float32),
        "b_h": params["b_h"].astype(jnp.float32),
        "w_o": params["w_o"].astype(jnp.float32),
        "b_o": params["b_o"].astype(jnp.float32),
    }


def _pick_tile_b(batch, tile_b):
    """Batch tile: multiple of 8, <= padded batch; split so the grid has >= 2
    'parallel' steps when the batch allows (v7x has 2 TensorCores)."""
    b8 = -(-batch // 8) * 8
    tile = max(8, min((tile_b // 8) * 8, b8))
    if tile == b8 and b8 > 8:
        tile = -(-(b8 // 2) // 8) * 8
    return tile


# ----------------------------------------------------------------------------
# Wrapper: batch grid, weights pinned via constant index_maps.
# ----------------------------------------------------------------------------
def audio_analysis_forward(mfcc_features, text_features, fused_params,
                           tile_b=512):
    """tile_b: max batch tile (multiple of 8). 512-1024 recommended for large
    batches (multiples of 256 ideal on v6e/v7x, 128 on v5e)."""
    B = mfcc_features.shape[0]
    tile = _pick_tile_b(B, tile_b)
    b_pad = pl.cdiv(B, tile) * tile
    if b_pad != B:
        mfcc_features = jnp.pad(mfcc_features, ((0, b_pad - B), (0, 0)))
        text_features = jnp.pad(text_features, ((0, b_pad - B), (0, 0)))

    grid = (b_pad // tile,)

    flops = 2 * b_pad * (MFCC_DIM * HIDDEN_DIM + TEXT_DIM * HIDDEN_DIM
                         + HIDDEN_DIM * HALF_DIM + HALF_DIM * OUT_DIM)
    bytes_accessed = (
        mfcc_features.size * mfcc_features.dtype.itemsize
        + text_features.size * text_features.dtype.itemsize
        + fused_params["w_mfcc"].size * 2 + fused_params["w_text"].size * 2
        + (fused_params["b_in"].size + fused_params["w_h"].size
           + fused_params["b_h"].size + fused_params["w_o"].size
           + fused_params["b_o"].size) * 4
        + b_pad * OUT_DIM * 4)

    out = pl.pallas_call(
        _audio_kernel,
        out_shape=jax.ShapeDtypeStruct((b_pad, OUT_DIM), jnp.float32),
        grid=grid,
        in_specs=[
            # activations: one batch tile per grid step (last dim = full array)
            pl.BlockSpec((tile, MFCC_DIM), lambda i: (i, 0)),
            pl.BlockSpec((tile, TEXT_DIM), lambda i: (i, 0)),
            # weights / biases: constant index_map -> VMEM-resident across steps
            pl.BlockSpec((MFCC_DIM, HIDDEN_DIM), lambda i: (0, 0)),
            pl.BlockSpec((TEXT_DIM, HIDDEN_DIM), lambda i: (0, 0)),
            pl.BlockSpec((1, HIDDEN_DIM), lambda i: (0, 0)),
            pl.BlockSpec((HIDDEN_DIM, HALF_DIM), lambda i: (0, 0)),
            pl.BlockSpec((1, HALF_DIM), lambda i: (0, 0)),
            pl.BlockSpec((HALF_DIM, OUT_DIM), lambda i: (0, 0)),
            pl.BlockSpec((1, OUT_DIM), lambda i: (0, 0)),
        ],
        # 2-lane output block (last dim equals full array dim -> legal); avoids
        # a padded 128-lane slab and the wrapper-side column slice.
        out_specs=pl.BlockSpec((tile, OUT_DIM), lambda i: (i, 0)),
        compiler_params=pltpu.CompilerParams(
            dimension_semantics=("parallel",)),
        cost_estimate=pl.CostEstimate(
            flops=flops,
            transcendentals=b_pad * OUT_DIM,
            bytes_accessed=bytes_accessed),
    )(mfcc_features, text_features,
      fused_params["w_mfcc"], fused_params["w_text"], fused_params["b_in"],
      fused_params["w_h"], fused_params["b_h"],
      fused_params["w_o"], fused_params["b_o"])

    return out[:B]


# ----------------------------------------------------------------------------
# Synthetic parameters (PyTorch layout transposed to [in, out]) and reference.
# ----------------------------------------------------------------------------
def init_params(key):
    keys = jax.random.split(key, 8)
    scale = 0.02
    return {
        "w_mfcc": scale * jax.random.normal(keys[0], (MFCC_DIM, HIDDEN_DIM), jnp.float32),
        "b_mfcc": scale * jax.random.normal(keys[1], (1, HIDDEN_DIM), jnp.float32),
        "w_text": scale * jax.random.normal(keys[2], (TEXT_DIM, HIDDEN_DIM), jnp.float32),
        "b_text": scale * jax.random.normal(keys[3], (1, HIDDEN_DIM), jnp.float32),
        "w_h":    scale * jax.random.normal(keys[4], (HIDDEN_DIM, HALF_DIM), jnp.float32),
        "b_h":    scale * jax.random.normal(keys[5], (1, HALF_DIM), jnp.float32),
        "w_o":    scale * jax.random.normal(keys[6], (HALF_DIM, OUT_DIM), jnp.float32),
        "b_o":    scale * jax.random.normal(keys[7], (1, OUT_DIM), jnp.float32),
    }


def reference_forward(mfcc_features, text_features, params):
    """Pure-JAX f32 reference, mirrors the PyTorch forward exactly."""
    mfcc = mfcc_features @ params["w_mfcc"] + params["b_mfcc"]
    text = text_features @ params["w_text"] + params["b_text"]
    combined = (mfcc + text) / 2
    h = jnp.maximum(combined @ params["w_h"] + params["b_h"], 0.0)
    return jax.nn.sigmoid(h @ params["w_o"] + params["b_o"]) * 10.0


if __name__ == "__main__":
    key = jax.random.PRNGKey(0)
    k_params, k_mfcc, k_text = jax.random.split(key, 3)

    B = 16  # small demo batch; auto-tiled into 2 'parallel' tiles of 8
    params = init_params(k_params)
    fused_params = prepare_params(params)

    mfcc_features = jax.random.normal(k_mfcc, (B, MFCC_DIM), jnp.float32)
    text_features = jax.random.normal(k_text, (B, TEXT_DIM), jnp.float32)

    out = audio_analysis_forward(mfcc_features, text_features, fused_params)
    out = jax.block_until_ready(out)

    ref = reference_forward(mfcc_features, text_features, params)
    assert out.shape == (B, OUT_DIM)
    # Single bf16 rounding (first-layer inputs/weights only) -> tight tolerance.
    assert jnp.allclose(out, ref, atol=2e-2, rtol=1e-2), "mismatch vs reference"

    print("KERNEL_OK")
</pallas_src>

<mosaic_0001>
module attributes {stable_mosaic.version = 11 : i64} {
  func.func @_audio_kernel(%arg0: i32, %arg1: memref<8x40xf32, #tpu.memory_space<vmem>>, %arg2: memref<8x768xf32, #tpu.memory_space<vmem>>, %arg3: memref<40x256xbf16, #tpu.memory_space<vmem>>, %arg4: memref<768x256xbf16, #tpu.memory_space<vmem>>, %arg5: memref<1x256xf32, #tpu.memory_space<vmem>>, %arg6: memref<256x128xf32, #tpu.memory_space<vmem>>, %arg7: memref<1x128xf32, #tpu.memory_space<vmem>>, %arg8: memref<128x2xf32, #tpu.memory_space<vmem>>, %arg9: memref<1x2xf32, #tpu.memory_space<vmem>>, %arg10: memref<8x2xf32, #tpu.memory_space<vmem>>) attributes {dimension_semantics = [#tpu.dimension_semantics<parallel>], iteration_bounds = array<i64: 2>, scalar_prefetch = 0 : i64, scratch_operands = 0 : i64, tpu.core_type = #tpu.core_type<tc>, window_params = [{transform_indices = @transform_0, window_bounds = array<i64: 8, 40>}, {transform_indices = @transform_1, window_bounds = array<i64: 8, 768>}, {pipeline_mode = #tpu.pipeline_mode<synchronous>, transform_indices = @transform_2, window_bounds = array<i64: 40, 256>}, {pipeline_mode = #tpu.pipeline_mode<synchronous>, transform_indices = @transform_3, window_bounds = array<i64: 768, 256>}, {pipeline_mode = #tpu.pipeline_mode<synchronous>, transform_indices = @transform_4, window_bounds = array<i64: 1, 256>}, {pipeline_mode = #tpu.pipeline_mode<synchronous>, transform_indices = @transform_5, window_bounds = array<i64: 256, 128>}, {pipeline_mode = #tpu.pipeline_mode<synchronous>, transform_indices = @transform_6, window_bounds = array<i64: 1, 128>}, {pipeline_mode = #tpu.pipeline_mode<synchronous>, transform_indices = @transform_7, window_bounds = array<i64: 128, 2>}, {pipeline_mode = #tpu.pipeline_mode<synchronous>, transform_indices = @transform_8, window_bounds = array<i64: 1, 2>}, {transform_indices = @transform_9, window_bounds = array<i64: 8, 2>}]} {
    %c0 = arith.constant 0 : index
    %c0_0 = arith.constant 0 : index
    %0 = vector.load %arg1[%c0, %c0_0] : memref<8x40xf32, #tpu.memory_space<vmem>>, vector<8x40xf32>
    %1 = arith.truncf %0 : vector<8x40xf32> to vector<8x40xbf16>
    %c0_1 = arith.constant 0 : index
    %c0_2 = arith.constant 0 : index
    %2 = vector.load %arg3[%c0_1, %c0_2] : memref<40x256xbf16, #tpu.memory_space<vmem>>, vector<40x256xbf16>
    %cst = arith.constant dense<0.000000e+00> : vector<8x256xf32>
    %3 = tpu.matmul %1, %2, %cst {dimension_numbers = #tpu.dot_dimension_numbers<[1], [0], [0], [1], [0, 0, 1, 1], [], []>} : vector<8x40xbf16>, vector<40x256xbf16>, vector<8x256xf32> -> vector<8x256xf32>
    %c0_3 = arith.constant 0 : index
    %c0_4 = arith.constant 0 : index
    %4 = vector.load %arg2[%c0_3, %c0_4] : memref<8x768xf32, #tpu.memory_space<vmem>>, vector<8x768xf32>
    %5 = arith.truncf %4 : vector<8x768xf32> to vector<8x768xbf16>
    %c0_5 = arith.constant 0 : index
    %c0_6 = arith.constant 0 : index
    %6 = vector.load %arg4[%c0_5, %c0_6] : memref<768x256xbf16, #tpu.memory_space<vmem>>, vector<768x256xbf16>
    %cst_7 = arith.constant dense<0.000000e+00> : vector<8x256xf32>
    %7 = tpu.matmul %5, %6, %cst_7 {dimension_numbers = #tpu.dot_dimension_numbers<[1], [0], [0], [1], [0, 0, 1, 1], [], []>} : vector<8x768xbf16>, vector<768x256xbf16>, vector<8x256xf32> -> vector<8x256xf32>
    %8 = arith.addf %3, %7 : vector<8x256xf32>
    %c0_8 = arith.constant 0 : index
    %c0_9 = arith.constant 0 : index
    %9 = vector.load %arg5[%c0_8, %c0_9] : memref<1x256xf32, #tpu.memory_space<vmem>>, vector<1x256xf32>
    %10 = vector.broadcast %9 : vector<1x256xf32> to vector<8x256xf32>
    %11 = arith.addf %8, %10 : vector<8x256xf32>
    %c0_10 = arith.constant 0 : index
    %c0_11 = arith.constant 0 : index
    %12 = vector.load %arg6[%c0_10, %c0_11] : memref<256x128xf32, #tpu.memory_space<vmem>>, vector<256x128xf32>
    %cst_12 = arith.constant dense<0.000000e+00> : vector<8x128xf32>
    %13 = tpu.matmul %11, %12, %cst_12 {dimension_numbers = #tpu.dot_dimension_numbers<[1], [0], [0], [1], [0, 0, 1, 1], [], []>} : vector<8x256xf32>, vector<256x128xf32>, vector<8x128xf32> -> vector<8x128xf32>
    %c0_13 = arith.constant 0 : index
    %c0_14 = arith.constant 0 : index
    %14 = vector.load %arg7[%c0_13, %c0_14] : memref<1x128xf32, #tpu.memory_space<vmem>>, vector<1x128xf32>
    %15 = vector.broadcast %14 : vector<1x128xf32> to vector<8x128xf32>
    %16 = arith.addf %13, %15 : vector<8x128xf32>
    %cst_15 = arith.constant 0.000000e+00 : f32
    %17 = vector.broadcast %cst_15 : f32 to vector<8x128xf32>
    %18 = arith.maximumf %16, %17 : vector<8x128xf32>
    %c0_16 = arith.constant 0 : index
    %c0_17 = arith.constant 0 : index
    %19 = vector.load %arg8[%c0_16, %c0_17] : memref<128x2xf32, #tpu.memory_space<vmem>>, vector<128x2xf32>
    %cst_18 = arith.constant dense<0.000000e+00> : vector<8x2xf32>
    %20 = tpu.matmul %18, %19, %cst_18 {dimension_numbers = #tpu.dot_dimension_numbers<[1], [0], [0], [1], [0, 0, 1, 1], [], []>} : vector<8x128xf32>, vector<128x2xf32>, vector<8x2xf32> -> vector<8x2xf32>
    %c0_19 = arith.constant 0 : index
    %c0_20 = arith.constant 0 : index
    %21 = vector.load %arg9[%c0_19, %c0_20] : memref<1x2xf32, #tpu.memory_space<vmem>>, vector<1x2xf32>
    %22 = vector.broadcast %21 : vector<1x2xf32> to vector<8x2xf32>
    %23 = arith.addf %20, %22 : vector<8x2xf32>
    %24 = arith.negf %23 : vector<8x2xf32>
    %25 = math.exp %24 : vector<8x2xf32>
    %cst_21 = arith.constant 1.000000e+00 : f32
    %26 = vector.broadcast %cst_21 : f32 to vector<8x2xf32>
    %27 = arith.addf %26, %25 : vector<8x2xf32>
    %28 = arith.divf %26, %27 : vector<8x2xf32>
    %cst_22 = arith.constant 1.000000e+01 : f32
    %29 = vector.broadcast %cst_22 : f32 to vector<8x2xf32>
    %30 = arith.mulf %28, %29 : vector<8x2xf32>
    %c0_23 = arith.constant 0 : index
    %c0_24 = arith.constant 0 : index
    %31 = vector.load %arg10[%c0_23, %c0_24] : memref<8x2xf32, #tpu.memory_space<vmem>>, vector<8x2xf32>
    tpu.vector_store %arg10[%c0_23, %c0_24], %30 {strides = array<i32>} : memref<8x2xf32, #tpu.memory_space<vmem>>, vector<8x2xf32>,
    return
  }
  func.func @transform_0(%arg0: i32) -> (i32, i32) {
    %c0_i32 = arith.constant 0 : i32
    %c0_i32_0 = arith.constant 0 : i32
    return %arg0, %c0_i32 : i32, i32
  }
  func.func @transform_1(%arg0: i32) -> (i32, i32) {
    %c0_i32 = arith.constant 0 : i32
    %c0_i32_0 = arith.constant 0 : i32
    return %arg0, %c0_i32 : i32, i32
  }
  func.func @transform_2(%arg0: i32) -> (i32, i32) {
    %c0_i32 = arith.constant 0 : i32
    %c0_i32_0 = arith.constant 0 : i32
    %c0_i32_1 = arith.constant 0 : i32
    return %c0_i32, %c0_i32_0 : i32, i32
  }
  func.func @transform_3(%arg0: i32) -> (i32, i32) {
    %c0_i32 = arith.constant 0 : i32
    %c0_i32_0 = arith.constant 0 : i32
    %c0_i32_1 = arith.constant 0 : i32
    return %c0_i32, %c0_i32_0 : i32, i32
  }
  func.func @transform_4(%arg0: i32) -> (i32, i32) {
    %c0_i32 = arith.constant 0 : i32
    %c0_i32_0 = arith.constant 0 : i32
    %c0_i32_1 = arith.constant 0 : i32
    return %c0_i32, %c0_i32_0 : i32, i32
  }
  func.func @transform_5(%arg0: i32) -> (i32, i32) {
    %c0_i32 = arith.constant 0 : i32
    %c0_i32_0 = arith.constant 0 : i32
    %c0_i32_1 = arith.constant 0 : i32
    return %c0_i32, %c0_i32_0 : i32, i32
  }
  func.func @transform_6(%arg0: i32) -> (i32, i32) {
    %c0_i32 = arith.constant 0 : i32
    %c0_i32_0 = arith.constant 0 : i32
    %c0_i32_1 = arith.constant 0 : i32
    return %c0_i32, %c0_i32_0 : i32, i32
  }
  func.func @transform_7(%arg0: i32) -> (i32, i32) {
    %c0_i32 = arith.constant 0 : i32
    %c0_i32_0 = arith.constant 0 : i32
    %c0_i32_1 = arith.constant 0 : i32
    return %c0_i32, %c0_i32_0 : i32, i32
  }
  func.func @transform_8(%arg0: i32) -> (i32, i32) {
    %c0_i32 = arith.constant 0 : i32
    %c0_i32_0 = arith.constant 0 : i32
    %c0_i32_1 = arith.constant 0 : i32
    return %c0_i32, %c0_i32_0 : i32, i32
  }
  func.func @transform_9(%arg0: i32) -> (i32, i32) {
    %c0_i32 = arith.constant 0 : i32
    %c0_i32_0 = arith.constant 0 : i32
    return %arg0, %c0_i32 : i32, i32
  }
}

</mosaic_0001>

<llo_original>
// kernel: tpu_custom_call.1
$region0: #{tpu_custom_call.1}
  #allocation0 [shape = 'u32[]', space=smem, size = 0x4, offset = 0x4, fixed_abs, tag = 'smem constant byte address 0x4 - core index']
  #allocation1 [shape = 'u32[144,128]{1,0:T(1,128)}', space=vmem, size = 0x12000, scoped, tag = 'internal scratch']
  %s0 = inlined_call_operand.vmem [shape: f32[16,40], index: 0, kind: input, shape index: {}]
  %s1 = inlined_call_operand.vmem [shape: f32[16,768], index: 1, kind: input, shape index: {}]
  %s2 = inlined_call_operand.hbm [shape: bf16[40,256], index: 2, kind: input, shape index: {}]
  %s3 = inlined_call_operand.hbm [shape: bf16[768,256], index: 3, kind: input, shape index: {}]
  %s4 = inlined_call_operand.vmem [shape: f32[1,256], index: 4, kind: input, shape index: {}]
  %s5 = inlined_call_operand.hbm [shape: f32[256,128], index: 5, kind: input, shape index: {}]
  %s6 = inlined_call_operand.vmem [shape: f32[1,128], index: 6, kind: input, shape index: {}]
  %s7 = inlined_call_operand.vmem [shape: f32[128,2], index: 7, kind: input, shape index: {}]
  %s8 = inlined_call_operand.vmem [shape: f32[1,2], index: 8, kind: input, shape index: {}]
  %s9 = inlined_call_operand.vmem [shape: f32[16,2], index: 9, kind: output, shape index: {}]
  %s10 = sld [smem:[#allocation0]]
  $region81: #{tpu_custom_call.1} parent=0
    _
  %s12 = ssub.s32 1, %s10
  %s13 = scalar_select 0, %s12, %s10
  $region1: #{tpu_custom_call.1} parent=0
    #allocation2 [shape = 'u8[20480]{0}', space=vmem, size = 0x5000, scoped, tag = 'input window, operand 2, single buffered']
    #allocation3 [shape = 's32[2]{0}', space=sflag, size = 0x8, scoped, tag = 'scoped memory for tpu_custom_call.1']
    #allocation4 [shape = 'u8[393216]{0}', space=vmem, size = 0x60000, scoped, tag = 'input window, operand 3, single buffered']
    #allocation5 [shape = 's32[1]{0}', space=sflag, size = 0x4, scoped, tag = 'scoped memory for tpu_custom_call.1']
    #allocation6 [shape = 'u8[131072]{0}', space=vmem, size = 0x20000, scoped, tag = 'input window, operand 5, single buffered']
    %14 = vsyncpa [#allocation3], 0
    %15 = vsyncpa [#allocation5], 0
    loop: start=0, step=1, limit=4
    $region2: #{tpu_custom_call.1} parent=1 // loop_pre_header
      _
    $region3: #{tpu_custom_call.1} parent=1 // loop_header
      %s17 = sphi 0, %s21
      %p18 = scmp.ge.s32.totalorder %s17, 4
      %s27 = sphi 0, %s29
      %s30 = sphi 0, %s27
      %s31 = sphi 0, %s30
      %s47 = sphi 0, %s31
      %s53 = sphi 0, %s55
      %s56 = sphi 0, %s53
      %s57 = sphi 0, %s56
      %s73 = sphi 0, %s57
      %s77 = sphi 0, %s77
      %s79 = sphi 0, %s77
      %s80 = sphi 0, %s79
      %s94 = sphi 0, %s80
      %s98 = sphi 0, %s98
      %s100 = sphi 0, %s98
      %s101 = sphi 0, %s100
      %s115 = sphi 0, %s101
      %s119 = sphi 0, %s119
      %s121 = sphi 0, %s119
      %s122 = sphi 0, %s121
      %s136 = sphi 0, %s122
      %s140 = sphi 0, %s140
      %s142 = sphi 0, %s140
      %s143 = sphi 0, %s142
      %s157 = sphi 0, %s143
      %s161 = sphi 0, %s161
      %s163 = sphi 0, %s161
      %s164 = sphi 0, %s163
      %s178 = sphi 0, %s164
      %s182 = sphi 0, %s182
      %s184 = sphi 0, %s182
      %s185 = sphi 0, %s184
      %s199 = sphi 0, %s185
      %s203 = sphi 0, %s203
      %s205 = sphi 0, %s203
      %s206 = sphi 0, %s205
      %s220 = sphi 0, %s206
      %s226 = sphi 0, %s228
      %s229 = sphi 0, %s226
      %s230 = sphi 0, %s229
      %s246 = sphi 0, %s230
    $region4: #{tpu_custom_call.1} parent=1 // loop_header_branch
      %20 = sbr.rel (%p18) target = $region8
    $region5: #{tpu_custom_call.1} parent=1 // loop_body
      %s22 = ssub.s32 %s17, 1
      %s23 = ssub.s32 %s17, 2
      %s24 = sadd.s32 %s17, 1
      %s25 = ssub.s32 %s17, %s24
      %p26 = scmp.eq.s32.totalorder %s25, 0
      %s28 = sadd.s32 %s27, 1
      %s29 = scalar_select %p26, %s27, %s28
      %p32 = pneg %p26
      %p33 = scmp.eq.s32.totalorder %s17, 1
      %p34 = por %p32, %p33
      %p35 = scmp.ne.s32.totalorder %s27, %s30
      %p36 = scmp.eq.s32.totalorder %s17, 0
      %p37 = por %p35, %p36
      %p38 = scmp.ne.s32.totalorder %s27, %s30
      %p39 = scmp.eq.s32.totalorder %s22, 1
      %p40 = por %p38, %p39
      %p41 = scmp.ne.s32.totalorder %s30, %s31
      %p42 = scmp.eq.s32.totalorder %s22, 0
      %p43 = por %p41, %p42
      %p44 = scmp.ne.s32.totalorder %s30, %s31
      %p45 = scmp.eq.s32.totalorder %s23, 1
      %p46 = por %p44, %p45
      %p48 = scmp.ne.s32.totalorder %s31, %s47
      %p49 = scmp.eq.s32.totalorder %s23, 0
      %p50 = por %p48, %p49
      %s51 = ssub.s32 %s17, %s24
      %p52 = scmp.eq.s32.totalorder %s51, 0
      %s54 = sadd.s32 %s53, 1
      %s55 = scalar_select %p52, %s53, %s54
      %p58 = pneg %p52
      %p59 = scmp.eq.s32.totalorder %s17, 1
      %p60 = por %p58, %p59
      %p61 = scmp.ne.s32.totalorder %s53, %s56
      %p62 = scmp.eq.s32.totalorder %s17, 0
      %p63 = por %p61, %p62
      %p64 = scmp.ne.s32.totalorder %s53, %s56
      %p65 = scmp.eq.s32.totalorder %s22, 1
      %p66 = por %p64, %p65
      %p67 = scmp.ne.s32.totalorder %s56, %s57
      %p68 = scmp.eq.s32.totalorder %s22, 0
      %p69 = por %p67, %p68
      %p70 = scmp.ne.s32.totalorder %s56, %s57
      %p71 = scmp.eq.s32.totalorder %s23, 1
      %p72 = por %p70, %p71
      %p74 = scmp.ne.s32.totalorder %s57, %s73
      %p75 = scmp.eq.s32.totalorder %s23, 0
      %p76 = por %p74, %p75
      %s78 = sadd.s32 %s77, 1
      %p81 = scmp.eq.s32.totalorder %s17, 1
      %p82 = scmp.ne.s32.totalorder %s77, %s79
      %p83 = scmp.eq.s32.totalorder %s17, 0
      %p84 = por %p82, %p83
      %p85 = scmp.ne.s32.totalorder %s77, %s79
      %p86 = scmp.eq.s32.totalorder %s22, 1
      %p87 = por %p85, %p86
      %p88 = scmp.ne.s32.totalorder %s79, %s80
      %p89 = scmp.eq.s32.totalorder %s22, 0
      %p90 = por %p88, %p89
      %p91 = scmp.ne.s32.totalorder %s79, %s80
      %p92 = scmp.eq.s32.totalorder %s23, 1
      %p93 = por %p91, %p92
      %p95 = scmp.ne.s32.totalorder %s80, %s94
      %p96 = scmp.eq.s32.totalorder %s23, 0
      %p97 = por %p95, %p96
      %s99 = sadd.s32 %s98, 1
      %p102 = scmp.eq.s32.totalorder %s17, 1
      %p103 = scmp.ne.s32.totalorder %s98, %s100
      %p104 = scmp.eq.s32.totalorder %s17, 0
      %p105 = por %p103, %p104
      %p106 = scmp.ne.s32.totalorder %s98, %s100
      %p107 = scmp.eq.s32.totalorder %s22, 1
      %p108 = por %p106, %p107
      %p109 = scmp.ne.s32.totalorder %s100, %s101
      %p110 = scmp.eq.s32.totalorder %s22, 0
      %p111 = por %p109, %p110
      %p112 = scmp.ne.s32.totalorder %s100, %s101
      %p113 = scmp.eq.s32.totalorder %s23, 1
      %p114 = por %p112, %p113
      %p116 = scmp.ne.s32.totalorder %s101, %s115
      %p117 = scmp.eq.s32.totalorder %s23, 0
      %p118 = por %p116, %p117
      %s120 = sadd.s32 %s119, 1
      %p123 = scmp.eq.s32.totalorder %s17, 1
      %p124 = scmp.ne.s32.totalorder %s119, %s121
      %p125 = scmp.eq.s32.totalorder %s17, 0
      %p126 = por %p124, %p125
      %p127 = scmp.ne.s32.totalorder %s119, %s121
      %p128 = scmp.eq.s32.totalorder %s22, 1
      %p129 = por %p127, %p128
      %p130 = scmp.ne.s32.totalorder %s121, %s122
      %p131 = scmp.eq.s32.totalorder %s22, 0
      %p132 = por %p130, %p131
      %p133 = scmp.ne.s32.totalorder %s121, %s122
      %p134 = scmp.eq.s32.totalorder %s23, 1
      %p135 = por %p133, %p134
      %p137 = scmp.ne.s32.totalorder %s122, %s136
      %p138 = scmp.eq.s32.totalorder %s23, 0
      %p139 = por %p137, %p138
      %s141 = sadd.s32 %s140, 1
      %p144 = scmp.eq.s32.totalorder %s17, 1
      %p145 = scmp.ne.s32.totalorder %s140, %s142
      %p146 = scmp.eq.s32.totalorder %s17, 0
      %p147 = por %p145, %p146
      %p148 = scmp.ne.s32.totalorder %s140, %s142
      %p149 = scmp.eq.s32.totalorder %s22, 1
      %p150 = por %p148, %p149
      %p151 = scmp.ne.s32.totalorder %s142, %s143
      %p152 = scmp.eq.s32.totalorder %s22, 0
      %p153 = por %p151, %p152
      %p154 = scmp.ne.s32.totalorder %s142, %s143
      %p155 = scmp.eq.s32.totalorder %s23, 1
      %p156 = por %p154, %p155
      %p158 = scmp.ne.s32.totalorder %s143, %s157
      %p159 = scmp.eq.s32.totalorder %s23, 0
      %p160 = por %p158, %p159
      %s162 = sadd.s32 %s161, 1
      %p165 = scmp.eq.s32.totalorder %s17, 1
      %p166 = scmp.ne.s32.totalorder %s161, %s163
      %p167 = scmp.eq.s32.totalorder %s17, 0
      %p168 = por %p166, %p167
      %p169 = scmp.ne.s32.totalorder %s161, %s163
      %p170 = scmp.eq.s32.totalorder %s22, 1
      %p171 = por %p169, %p170
      %p172 = scmp.ne.s32.totalorder %s163, %s164
      %p173 = scmp.eq.s32.totalorder %s22, 0
      %p174 = por %p172, %p173
      %p175 = scmp.ne.s32.totalorder %s163, %s164
      %p176 = scmp.eq.s32.totalorder %s23, 1
      %p177 = por %p175, %p176
      %p179 = scmp.ne.s32.totalorder %s164, %s178
      %p180 = scmp.eq.s32.totalorder %s23, 0
      %p181 = por %p179, %p180
      %s183 = sadd.s32 %s182, 1
      %p186 = scmp.eq.s32.totalorder %s17, 1
      %p187 = scmp.ne.s32.totalorder %s182, %s184
      %p188 = scmp.eq.s32.totalorder %s17, 0
      %p189 = por %p187, %p188
      %p190 = scmp.ne.s32.totalorder %s182, %s184
      %p191 = scmp.eq.s32.totalorder %s22, 1
      %p192 = por %p190, %p191
      %p193 = scmp.ne.s32.totalorder %s184, %s185
      %p194 = scmp.eq.s32.totalorder %s22, 0
      %p195 = por %p193, %p194
      %p196 = scmp.ne.s32.totalorder %s184, %s185
      %p197 = scmp.eq.s32.totalorder %s23, 1
      %p198 = por %p196, %p197
      %p200 = scmp.ne.s32.totalorder %s185, %s199
      %p201 = scmp.eq.s32.totalorder %s23, 0
      %p202 = por %p200, %p201
      %s204 = sadd.s32 %s203, 1
      %p207 = scmp.eq.s32.totalorder %s17, 1
      %p208 = scmp.ne.s32.totalorder %s203, %s205
      %p209 = scmp.eq.s32.totalorder %s17, 0
      %p210 = por %p208, %p209
      %p211 = scmp.ne.s32.totalorder %s203, %s205
      %p212 = scmp.eq.s32.totalorder %s22, 1
      %p213 = por %p211, %p212
      %p214 = scmp.ne.s32.totalorder %s205, %s206
      %p215 = scmp.eq.s32.totalorder %s22, 0
      %p216 = por %p214, %p215
      %p217 = scmp.ne.s32.totalorder %s205, %s206
      %p218 = scmp.eq.s32.totalorder %s23, 1
      %p219 = por %p217, %p218
      %p221 = scmp.ne.s32.totalorder %s206, %s220
      %p222 = scmp.eq.s32.totalorder %s23, 0
      %p223 = por %p221, %p222
      %s224 = ssub.s32 %s17, %s24
      %p225 = scmp.eq.s32.totalorder %s224, 0
      %s227 = sadd.s32 %s226, 1
      %s228 = scalar_select %p225, %s226, %s227
      %p231 = pneg %p225
      %p232 = scmp.eq.s32.totalorder %s17, 1
      %p233 = por %p231, %p232
      %p234 = scmp.ne.s32.totalorder %s226, %s229
      %p235 = scmp.eq.s32.totalorder %s17, 0
      %p236 = por %p234, %p235
      %p237 = scmp.ne.s32.totalorder %s226, %s229
      %p238 = scmp.eq.s32.totalorder %s22, 1
      %p239 = por %p237, %p238
      %p240 = scmp.ne.s32.totalorder %s229, %s230
      %p241 = scmp.eq.s32.totalorder %s22, 0
      %p242 = por %p240, %p241
      %p243 = scmp.ne.s32.totalorder %s229, %s230
      %p244 = scmp.eq.s32.totalorder %s23, 1
      %p245 = por %p243, %p244
      %p247 = scmp.ne.s32.totalorder %s230, %s246
      %p248 = scmp.eq.s32.totalorder %s23, 0
      %p249 = por %p247, %p248
      %p250 = scmp.le.s32.totalorder 1, %s17
      %p251 = scmp.lt.s32.totalorder %s17, 3
      %p252 = pnand %p250, %p251
      %p253 = pneg %p252
      // Predicated region
      $region9: #{tpu_custom_call.1} parent=5 // pred_check
        _
      $region10: #{tpu_custom_call.1} parent=5 // pred_check_branch
        %255 = sbr.rel (%p252) target = $region12
      $region11: #{tpu_custom_call.1} parent=5 // pred_region
        %s256 = ssub.s32 %s17, 1
        // Predicated region
        $region13: #{tpu_custom_call.1} parent=11 // pred_check
          %p257 = pneg %p90
        $region14: #{tpu_custom_call.1} parent=11 // pred_check_branch
          %259 = sbr.rel (%p257) target = $region16
        $region15: #{tpu_custom_call.1} parent=11 // pred_region
          %s261 = ssub.s32 640, 640
          %262 = vsyncadd [#allocation3], %s261
          %s263 = sshll.u32 [#allocation2], 4
          %s264 = int_to_ptr.vmem [resolvable:$true] %s263
          %269 = dma.hbm_to_vmem [thread:$0]  %s2, 640, %s264, [#allocation3], 128, 128, 8
        $region16: #{tpu_custom_call.1} parent=11 // pred_fallthru
          _
        // Predicated region
        $region17: #{tpu_custom_call.1} parent=11 // pred_check
          %p270 = pneg %p111
        $region18: #{tpu_custom_call.1} parent=11 // pred_check_branch
          %272 = sbr.rel (%p270) target = $region20
        $region19: #{tpu_custom_call.1} parent=11 // pred_region
          %s274 = ssub.s32 12288, 12288
          %275 = vsyncadd [#allocation5], %s274
          %s276 = sshll.u32 [#allocation4], 4
          %s277 = int_to_ptr.vmem [resolvable:$true] %s276
          %282 = dma.hbm_to_vmem [thread:$0]  %s3, 12288, %s277, [#allocation5], 128, 128, 8
        $region20: #{tpu_custom_call.1} parent=11 // pred_fallthru
          _
        // Predicated region
        $region21: #{tpu_custom_call.1} parent=11 // pred_check
          %p283 = pneg %p132
        $region22: #{tpu_custom_call.1} parent=11 // pred_check_branch
          %285 = sbr.rel (%p283) target = $region24
        $region23: #{tpu_custom_call.1} parent=11 // pred_region
          _
        $region24: #{tpu_custom_call.1} parent=11 // pred_fallthru
          _
        // Predicated region
        $region25: #{tpu_custom_call.1} parent=11 // pred_check
          %p286 = pneg %p153
        $region26: #{tpu_custom_call.1} parent=11 // pred_check_branch
          %288 = sbr.rel (%p286) target = $region28
        $region27: #{tpu_custom_call.1} parent=11 // pred_region
          %s290 = ssub.s32 4096, 4096
          %291 = vsyncadd [#allocation5], %s290
          %s292 = sshll.u32 [#allocation6], 4
          %s293 = int_to_ptr.vmem [resolvable:$true] %s292
          %298 = dma.hbm_to_vmem [thread:$0]  %s5, 4096, %s293, [#allocation5], 128, 128, 8
        $region28: #{tpu_custom_call.1} parent=11 // pred_fallthru
          _
        // Predicated region
        $region29: #{tpu_custom_call.1} parent=11 // pred_check
          %p299 = pneg %p174
        $region30: #{tpu_custom_call.1} parent=11 // pred_check_branch
          %301 = sbr.rel (%p299) target = $region32
        $region31: #{tpu_custom_call.1} parent=11 // pred_region
          _
        $region32: #{tpu_custom_call.1} parent=11 // pred_fallthru
          _
        // Predicated region
        $region33: #{tpu_custom_call.1} parent=11 // pred_check
          %p302 = pneg %p195
        $region34: #{tpu_custom_call.1} parent=11 // pred_check_branch
          %304 = sbr.rel (%p302) target = $region36
        $region35: #{tpu_custom_call.1} parent=11 // pred_region
          _
        $region36: #{tpu_custom_call.1} parent=11 // pred_fallthru
          _
        // Predicated region
        $region37: #{tpu_custom_call.1} parent=11 // pred_check
          %p305 = pneg %p216
        $region38: #{tpu_custom_call.1} parent=11 // pred_check_branch
          %307 = sbr.rel (%p305) target = $region40
        $region39: #{tpu_custom_call.1} parent=11 // pred_region
          _
        $region40: #{tpu_custom_call.1} parent=11 // pred_fallthru
          _
      $region12: #{tpu_custom_call.1} parent=5 // pred_fallthru
        _
      %p308 = scmp.lt.s32.totalorder %s17, 2
      // Predicated region
      $region41: #{tpu_custom_call.1} parent=5 // pred_check
        %p309 = pneg %p308
      $region42: #{tpu_custom_call.1} parent=5 // pred_check_branch
        %311 = sbr.rel (%p309) target = $region44
      $region43: #{tpu_custom_call.1} parent=5 // pred_region
        // Predicated region
        $region45: #{tpu_custom_call.1} parent=43 // pred_check
          %p312 = pneg %p37
        $region46: #{tpu_custom_call.1} parent=43 // pred_check_branch
          %314 = sbr.rel (%p312) target = $region48
        $region47: #{tpu_custom_call.1} parent=43 // pred_region
          %p315 = scmp.lt.s32.totalorder %s17, 1
          %s316 = scalar_select %p315, %s17, 1
          %s317 = smul.addr %s316, 8
          %s318 = scalar_lea.vmem %s0, %s317
        $region48: #{tpu_custom_call.1} parent=43 // pred_fallthru
          _
        // Predicated region
        $region49: #{tpu_custom_call.1} parent=43 // pred_check
          %p319 = pneg %p63
        $region50: #{tpu_custom_call.1} parent=43 // pred_check_branch
          %321 = sbr.rel (%p319) target = $region52
        $region51: #{tpu_custom_call.1} parent=43 // pred_region
          %p322 = scmp.lt.s32.totalorder %s17, 1
          %s323 = scalar_select %p322, %s17, 1
          %s324 = smul.addr %s323, 6
          %s325 = smul.addr %s324, 8
          %s326 = scalar_lea.vmem %s1, %s325
        $region52: #{tpu_custom_call.1} parent=43 // pred_fallthru
          _
      $region44: #{tpu_custom_call.1} parent=5 // pred_fallthru
        _
      %p327 = scmp.le.s32.totalorder 1, %s17
      %p328 = scmp.lt.s32.totalorder %s17, 3
      %p329 = pnand %p327, %p328
      %p330 = pneg %p329
      // Predicated region
      $region53: #{tpu_custom_call.1} parent=5 // pred_check
        _
      $region54: #{tpu_custom_call.1} parent=5 // pred_check_branch
        %332 = sbr.rel (%p329) target = $region56
      $region55: #{tpu_custom_call.1} parent=5 // pred_region
        %s333 = ssub.s32 %s17, 1
        // Predicated region
        $region57: #{tpu_custom_call.1} parent=55 // pred_check
          %p334 = pneg %p90
        $region58: #{tpu_custom_call.1} parent=55 // pred_check_branch
          %336 = sbr.rel (%p334) target = $region60
        $region59: #{tpu_custom_call.1} parent=55 // pred_region
          %337 = dma.done [#allocation3], 640
        $region60: #{tpu_custom_call.1} parent=55 // pred_fallthru
          _
        // Predicated region
        $region61: #{tpu_custom_call.1} parent=55 // pred_check
          %p338 = pneg %p111
        $region62: #{tpu_custom_call.1} parent=55 // pred_check_branch
          %340 = sbr.rel (%p338) target = $region64
        $region63: #{tpu_custom_call.1} parent=55 // pred_region
          %341 = dma.done [#allocation5], 12288
        $region64: #{tpu_custom_call.1} parent=55 // pred_fallthru
          _
        // Predicated region
        $region65: #{tpu_custom_call.1} parent=55 // pred_check
          %p342 = pneg %p153
        $region66: #{tpu_custom_call.1} parent=55 // pred_check_branch
          %344 = sbr.rel (%p342) target = $region68
        $region67: #{tpu_custom_call.1} parent=55 // pred_region
          %345 = dma.done [#allocation5], 4096
        $region68: #{tpu_custom_call.1} parent=55 // pred_fallthru
          _
        %p346 = scmp.lt.s32.totalorder %s22, 1
        %s347 = scalar_select %p346, %s22, 1
        %s348 = smul.addr %s347, 8
        %s349 = scalar_lea.vmem %s0, %s348
        %p350 = pneg %p43
        %p351 = pneg %p40
        %p352 = scmp.lt.s32.totalorder %s22, 1
        %s353 = scalar_select %p352, %s22, 1
        %s354 = smul.addr %s353, 6
        %s355 = smul.addr %s354, 8
        %s356 = scalar_lea.vmem %s1, %s355
        %p357 = pneg %p69
        %p358 = pneg %p66
        %p359 = pneg %p90
        %p360 = pneg %p87
        %p361 = pneg %p111
        %p362 = pneg %p108
        %p363 = pneg %p132
        %p364 = pneg %p129
        %p365 = pneg %p153
        %p366 = pneg %p150
        %p367 = pneg %p174
        %p368 = pneg %p171
        %p369 = pneg %p195
        %p370 = pneg %p192
        %p371 = pneg %p216
        %p372 = pneg %p213
        %p373 = pneg %p242
        %p374 = pneg %p239
        %p375 = scmp.lt.s32.totalorder %s22, 1
        %s376 = scalar_select %p375, %s22, 1
        %s377 = smul.addr %s376, 8
        %s378 = scalar_lea.vmem %s9, %s377
        %p379 = scmp.lt.s32.totalorder %s22, 1
        %s380 = scalar_select %p379, %s22, 1
        %s381 = smul.addr %s380, 8
        %s382 = scalar_lea.vmem %s0, %s381
        %p383 = scmp.lt.s32.totalorder %s22, 1
        %s384 = scalar_select %p383, %s22, 1
        %s385 = smul.addr %s384, 6
        %s386 = smul.addr %s385, 8
        %s387 = scalar_lea.vmem %s1, %s386
        %p388 = scmp.lt.s32.totalorder %s22, 1
        %s389 = scalar_select %p388, %s22, 1
        %s390 = smul.addr %s389, 8
        %s391 = scalar_lea.vmem %s9, %s390
        %v393 = vld [vmem:[%s382] sm:$0xff]
        %v394 = vpack.c.bf16 %v393, %v393
        %v395 = vld [vmem:[#allocation2] sm:$0xff]
        %v396 = vld [vmem:[#allocation2 + $0x8] sm:$0xff]
        %v397 = vld [vmem:[#allocation2 + $0x10] sm:$0xff]
        %v398 = vld [vmem:[#allocation2 + $0x18] sm:$0xff]
        %v399 = vld [vmem:[#allocation2 + $0x20] sm:$0xff]
        %v400 = vld [vmem:[%s387] sm:$0xff]
        %v401 = vld [vmem:[%s387 + $0x8] sm:$0xff]
        %v402 = vld [vmem:[%s387 + $0x10] sm:$0xff]
        %v403 = vld [vmem:[%s387 + $0x18] sm:$0xff]
        %v404 = vld [vmem:[%s387 + $0x20] sm:$0xff]
        %v405 = vld [vmem:[%s387 + $0x28] sm:$0xff]
        %v406 = vpack.c.bf16 %v400, %v400
        %v407 = vpack.c.bf16 %v401, %v401
        %v408 = vpack.c.bf16 %v402, %v402
        %v409 = vpack.c.bf16 %v403, %v403
        %v410 = vpack.c.bf16 %v404, %v404
        %v411 = vpack.c.bf16 %v405, %v405
        %v412 = vld [vmem:[#allocation4] sm:$0xff]
        %v413 = vld [vmem:[#allocation4 + $0x8] sm:$0xff]
        %v414 = vld [vmem:[#allocation4 + $0x10] sm:$0xff]
        %v415 = vld [vmem:[#allocation4 + $0x18] sm:$0xff]
        %v416 = vld [vmem:[#allocation4 + $0x20] sm:$0xff]
        %v417 = vld [vmem:[#allocation4 + $0x28] sm:$0xff]
        %v418 = vld [vmem:[#allocation4 + $0x30] sm:$0xff]
        %v419 = vld [vmem:[#allocation4 + $0x38] sm:$0xff]
        %v420 = vld [vmem:[#allocation4 + $0x40] sm:$0xff]
        %v421 = vld [vmem:[#allocation4 + $0x48] sm:$0xff]
        %v422 = vld [vmem:[#allocation4 + $0x50] sm:$0xff]
        %v423 = vld [vmem:[#allocation4 + $0x58] sm:$0xff]
        %v424 = vld [vmem:[#allocation4 + $0x60] sm:$0xff]
        %v425 = vld [vmem:[#allocation4 + $0x68] sm:$0xff]
        %v426 = vld [vmem:[#allocation4 + $0x70] sm:$0xff]
        %v427 = vld [vmem:[#allocation4 + $0x78] sm:$0xff]
        %v428 = vld [vmem:[#allocation4 + $0x80] sm:$0xff]
        %v429 = vld [vmem:[#allocation4 + $0x88] sm:$0xff]
        %v430 = vld [vmem:[#allocation4 + $0x90] sm:$0xff]
        %v431 = vld [vmem:[#allocation4 + $0x98] sm:$0xff]
        %v432 = vld [vmem:[#allocation4 + $0xa0] sm:$0xff]
        %v433 = vld [vmem:[#allocation4 + $0xa8] sm:$0xff]
        %v434 = vld [vmem:[#allocation4 + $0xb0] sm:$0xff]
        %v435 = vld [vmem:[#allocation4 + $0xb8] sm:$0xff]
        %v436 = vld [vmem:[#allocation4 + $0xc0] sm:$0xff]
        %v437 = vld [vmem:[#allocation4 + $0xc8] sm:$0xff]
        %v438 = vld [vmem:[#allocation4 + $0xd0] sm:$0xff]
        %v439 = vld [vmem:[#allocation4 + $0xd8] sm:$0xff]
        %v440 = vld [vmem:[#allocation4 + $0xe0] sm:$0xff]
        %v441 = vld [vmem:[#allocation4 + $0xe8] sm:$0xff]
        %v442 = vld [vmem:[#allocation4 + $0xf0] sm:$0xff]
        %v443 = vld [vmem:[#allocation4 + $0xf8] sm:$0xff]
        %v444 = vld [vmem:[#allocation4 + $0x100] sm:$0xff]
        %v445 = vld [vmem:[#allocation4 + $0x108] sm:$0xff]
        %v446 = vld [vmem:[#allocation4 + $0x110] sm:$0xff]
        %v447 = vld [vmem:[#allocation4 + $0x118] sm:$0xff]
        %v448 = vld [vmem:[#allocation4 + $0x120] sm:$0xff]
        %v449 = vld [vmem:[#allocation4 + $0x128] sm:$0xff]
        %v450 = vld [vmem:[#allocation4 + $0x130] sm:$0xff]
        %v451 = vld [vmem:[#allocation4 + $0x138] sm:$0xff]
        %v452 = vld [vmem:[#allocation4 + $0x140] sm:$0xff]
        %v453 = vld [vmem:[#allocation4 + $0x148] sm:$0xff]
        %v454 = vld [vmem:[#allocation4 + $0x150] sm:$0xff]
        %v455 = vld [vmem:[#allocation4 + $0x158] sm:$0xff]
        %v456 = vld [vmem:[#allocation4 + $0x160] sm:$0xff]
        %v457 = vld [vmem:[#allocation4 + $0x168] sm:$0xff]
        %v458 = vld [vmem:[#allocation4 + $0x170] sm:$0xff]
        %v459 = vld [vmem:[#allocation4 + $0x178] sm:$0xff]
        %v460 = vld [vmem:[#allocation4 + $0x180] sm:$0xff]
        %v461 = vld [vmem:[#allocation4 + $0x188] sm:$0xff]
        %v462 = vld [vmem:[#allocation4 + $0x190] sm:$0xff]
        %v463 = vld [vmem:[#allocation4 + $0x198] sm:$0xff]
        %v464 = vld [vmem:[#allocation4 + $0x1a0] sm:$0xff]
        %v465 = vld [vmem:[#allocation4 + $0x1a8] sm:$0xff]
        %v466 = vld [vmem:[#allocation4 + $0x1b0] sm:$0xff]
        %v467 = vld [vmem:[#allocation4 + $0x1b8] sm:$0xff]
        %v468 = vld [vmem:[#allocation4 + $0x1c0] sm:$0xff]
        %v469 = vld [vmem:[#allocation4 + $0x1c8] sm:$0xff]
        %v470 = vld [vmem:[#allocation4 + $0x1d0] sm:$0xff]
        %v471 = vld [vmem:[#allocation4 + $0x1d8] sm:$0xff]
        %v472 = vld [vmem:[#allocation4 + $0x1e0] sm:$0xff]
        %v473 = vld [vmem:[#allocation4 + $0x1e8] sm:$0xff]
        %v474 = vld [vmem:[#allocation4 + $0x1f0] sm:$0xff]
        %v475 = vld [vmem:[#allocation4 + $0x1f8] sm:$0xff]
        %v476 = vld [vmem:[#allocation4 + $0x200] sm:$0xff]
        %v477 = vld [vmem:[#allocation4 + $0x208] sm:$0xff]
        %v478 = vld [vmem:[#allocation4 + $0x210] sm:$0xff]
        %v479 = vld [vmem:[#allocation4 + $0x218] sm:$0xff]
        %v480 = vld [vmem:[#allocation4 + $0x220] sm:$0xff]
        %v481 = vld [vmem:[#allocation4 + $0x228] sm:$0xff]
        %v482 = vld [vmem:[#allocation4 + $0x230] sm:$0xff]
        %v483 = vld [vmem:[#allocation4 + $0x238] sm:$0xff]
        %v484 = vld [vmem:[#allocation4 + $0x240] sm:$0xff]
        %v485 = vld [vmem:[#allocation4 + $0x248] sm:$0xff]
        %v486 = vld [vmem:[#allocation4 + $0x250] sm:$0xff]
        %v487 = vld [vmem:[#allocation4 + $0x258] sm:$0xff]
        %v488 = vld [vmem:[#allocation4 + $0x260] sm:$0xff]
        %v489 = vld [vmem:[#allocation4 + $0x268] sm:$0xff]
        %v490 = vld [vmem:[#allocation4 + $0x270] sm:$0xff]
        %v491 = vld [vmem:[#allocation4 + $0x278] sm:$0xff]
        %v492 = vld [vmem:[#allocation4 + $0x280] sm:$0xff]
        %v493 = vld [vmem:[#allocation4 + $0x288] sm:$0xff]
        %v494 = vld [vmem:[#allocation4 + $0x290] sm:$0xff]
        %v495 = vld [vmem:[#allocation4 + $0x298] sm:$0xff]
        %v496 = vld [vmem:[#allocation4 + $0x2a0] sm:$0xff]
        %v497 = vld [vmem:[#allocation4 + $0x2a8] sm:$0xff]
        %v498 = vld [vmem:[#allocation4 + $0x2b0] sm:$0xff]
        %v499 = vld [vmem:[#allocation4 + $0x2b8] sm:$0xff]
        %v500 = vld [vmem:[#allocation4 + $0x2c0] sm:$0xff]
        %v501 = vld [vmem:[#allocation4 + $0x2c8] sm:$0xff]
        %v502 = vld [vmem:[#allocation4 + $0x2d0] sm:$0xff]
        %v503 = vld [vmem:[#allocation4 + $0x2d8] sm:$0xff]
        %v504 = vld [vmem:[#allocation4 + $0x2e0] sm:$0xff]
        %v505 = vld [vmem:[#allocation4 + $0x2e8] sm:$0xff]
        %v506 = vld [vmem:[#allocation4 + $0x2f0] sm:$0xff]
        %v507 = vld [vmem:[#allocation4 + $0x2f8] sm:$0xff]
        %v604 = vunpack.c.l.b16 %v412
        %v605 = vunpack.c.h.b16 %v412
        %v606 = vunpack.c.l.b16 %v413
        %v607 = vunpack.c.h.b16 %v413
        %v608 = vunpack.c.l.b16 %v414
        %v609 = vunpack.c.h.b16 %v414
        %v610 = vunpack.c.l.b16 %v415
        %v611 = vunpack.c.h.b16 %v415
        %v612 = vunpack.c.l.b16 %v416
        %v613 = vunpack.c.h.b16 %v416
        %v614 = vunpack.c.l.b16 %v417
        %v615 = vunpack.c.h.b16 %v417
        %v616 = vunpack.c.l.b16 %v418
        %v617 = vunpack.c.h.b16 %v418
        %v618 = vunpack.c.l.b16 %v419
        %v619 = vunpack.c.h.b16 %v419
        %v620 = vunpack.c.l.b16 %v420
        %v621 = vunpack.c.h.b16 %v420
        %v622 = vunpack.c.l.b16 %v421
        %v623 = vunpack.c.h.b16 %v421
        %v624 = vunpack.c.l.b16 %v422
        %v625 = vunpack.c.h.b16 %v422
        %v626 = vunpack.c.l.b16 %v423
        %v627 = vunpack.c.h.b16 %v423
        %v628 = vunpack.c.l.b16 %v424
        %v629 = vunpack.c.h.b16 %v424
        %v630 = vunpack.c.l.b16 %v425
        %v631 = vunpack.c.h.b16 %v425
        %v632 = vunpack.c.l.b16 %v426
        %v633 = vunpack.c.h.b16 %v426
        %v634 = vunpack.c.l.b16 %v427
        %v635 = vunpack.c.h.b16 %v427
        %v636 = vunpack.c.l.b16 %v428
        %v637 = vunpack.c.h.b16 %v428
        %v638 = vunpack.c.l.b16 %v429
        %v639 = vunpack.c.h.b16 %v429
        %v640 = vunpack.c.l.b16 %v430
        %v641 = vunpack.c.h.b16 %v430
        %v642 = vunpack.c.l.b16 %v431
        %v643 = vunpack.c.h.b16 %v431
        %v644 = vunpack.c.l.b16 %v432
        %v645 = vunpack.c.h.b16 %v432
        %v646 = vunpack.c.l.b16 %v433
        %v647 = vunpack.c.h.b16 %v433
        %v648 = vunpack.c.l.b16 %v434
        %v649 = vunpack.c.h.b16 %v434
        %v650 = vunpack.c.l.b16 %v435
        %v651 = vunpack.c.h.b16 %v435
        %v652 = vunpack.c.l.b16 %v436
        %v653 = vunpack.c.h.b16 %v436
        %v654 = vunpack.c.l.b16 %v437
        %v655 = vunpack.c.h.b16 %v437
        %v656 = vunpack.c.l.b16 %v438
        %v657 = vunpack.c.h.b16 %v438
        %v658 = vunpack.c.l.b16 %v439
        %v659 = vunpack.c.h.b16 %v439
        %v660 = vunpack.c.l.b16 %v440
        %v661 = vunpack.c.h.b16 %v440
        %v662 = vunpack.c.l.b16 %v441
        %v663 = vunpack.c.h.b16 %v441
        %v664 = vunpack.c.l.b16 %v442
        %v665 = vunpack.c.h.b16 %v442
        %v666 = vunpack.c.l.b16 %v443
        %v667 = vunpack.c.h.b16 %v443
        %v668 = vunpack.c.l.b16 %v444
        %v669 = vunpack.c.h.b16 %v444
        %v670 = vunpack.c.l.b16 %v445
        %v671 = vunpack.c.h.b16 %v445
        %v672 = vunpack.c.l.b16 %v446
        %v673 = vunpack.c.h.b16 %v446
        %v674 = vunpack.c.l.b16 %v447
        %v675 = vunpack.c.h.b16 %v447
        %v676 = vunpack.c.l.b16 %v448
        %v677 = vunpack.c.h.b16 %v448
        %v678 = vunpack.c.l.b16 %v449
        %v679 = vunpack.c.h.b16 %v449
        %v680 = vunpack.c.l.b16 %v450
        %v681 = vunpack.c.h.b16 %v450
        %v682 = vunpack.c.l.b16 %v451
        %v683 = vunpack.c.h.b16 %v451
        %v684 = vunpack.c.l.b16 %v452
        %v685 = vunpack.c.h.b16 %v452
        %v686 = vunpack.c.l.b16 %v453
        %v687 = vunpack.c.h.b16 %v453
        %v688 = vunpack.c.l.b16 %v454
        %v689 = vunpack.c.h.b16 %v454
        %v690 = vunpack.c.l.b16 %v455
        %v691 = vunpack.c.h.b16 %v455
        %v692 = vunpack.c.l.b16 %v456
        %v693 = vunpack.c.h.b16 %v456
        %v694 = vunpack.c.l.b16 %v457
        %v695 = vunpack.c.h.b16 %v457
        %v696 = vunpack.c.l.b16 %v458
        %v697 = vunpack.c.h.b16 %v458
        %v698 = vunpack.c.l.b16 %v459
        %v699 = vunpack.c.h.b16 %v459
        %v700 = vunpack.c.l.b16 %v460
        %v701 = vunpack.c.h.b16 %v460
        %v702 = vunpack.c.l.b16 %v461
        %v703 = vunpack.c.h.b16 %v461
        %v704 = vunpack.c.l.b16 %v462
        %v705 = vunpack.c.h.b16 %v462
        %v706 = vunpack.c.l.b16 %v463
        %v707 = vunpack.c.h.b16 %v463
        %v708 = vunpack.c.l.b16 %v464
        %v709 = vunpack.c.h.b16 %v464
        %v710 = vunpack.c.l.b16 %v465
        %v711 = vunpack.c.h.b16 %v465
        %v712 = vunpack.c.l.b16 %v466
        %v713 = vunpack.c.h.b16 %v466
        %v714 = vunpack.c.l.b16 %v467
        %v715 = vunpack.c.h.b16 %v467
        %v716 = vunpack.c.l.b16 %v468
        %v717 = vunpack.c.h.b16 %v468
        %v718 = vunpack.c.l.b16 %v469
        %v719 = vunpack.c.h.b16 %v469
        %v720 = vunpack.c.l.b16 %v470
        %v721 = vunpack.c.h.b16 %v470
        %v722 = vunpack.c.l.b16 %v471
        %v723 = vunpack.c.h.b16 %v471
        %v724 = vunpack.c.l.b16 %v472
        %v725 = vunpack.c.h.b16 %v472
        %v726 = vunpack.c.l.b16 %v473
        %v727 = vunpack.c.h.b16 %v473
        %v728 = vunpack.c.l.b16 %v474
        %v729 = vunpack.c.h.b16 %v474
        %v730 = vunpack.c.l.b16 %v475
        %v731 = vunpack.c.h.b16 %v475
        %v732 = vunpack.c.l.b16 %v476
        %v733 = vunpack.c.h.b16 %v476
        %v734 = vunpack.c.l.b16 %v477
        %v735 = vunpack.c.h.b16 %v477
        %v736 = vunpack.c.l.b16 %v478
        %v737 = vunpack.c.h.b16 %v478
        %v738 = vunpack.c.l.b16 %v479
        %v739 = vunpack.c.h.b16 %v479
        %v740 = vunpack.c.l.b16 %v480
        %v741 = vunpack.c.h.b16 %v480
        %v742 = vunpack.c.l.b16 %v481
        %v743 = vunpack.c.h.b16 %v481
        %v744 = vunpack.c.l.b16 %v482
        %v745 = vunpack.c.h.b16 %v482
        %v746 = vunpack.c.l.b16 %v483
        %v747 = vunpack.c.h.b16 %v483
        %v748 = vunpack.c.l.b16 %v484
        %v749 = vunpack.c.h.b16 %v484
        %v750 = vunpack.c.l.b16 %v485
        %v751 = vunpack.c.h.b16 %v485
        %v752 = vunpack.c.l.b16 %v486
        %v753 = vunpack.c.h.b16 %v486
        %v754 = vunpack.c.l.b16 %v487
        %v755 = vunpack.c.h.b16 %v487
        %v756 = vunpack.c.l.b16 %v488
        %v757 = vunpack.c.h.b16 %v488
        %v758 = vunpack.c.l.b16 %v489
        %v759 = vunpack.c.h.b16 %v489
        %v760 = vunpack.c.l.b16 %v490
        %v761 = vunpack.c.h.b16 %v490
        %v762 = vunpack.c.l.b16 %v491
        %v763 = vunpack.c.h.b16 %v491
        %v764 = vunpack.c.l.b16 %v492
        %v765 = vunpack.c.h.b16 %v492
        %v766 = vunpack.c.l.b16 %v493
        %v767 = vunpack.c.h.b16 %v493
        %v768 = vunpack.c.l.b16 %v494
        %v769 = vunpack.c.h.b16 %v494
        %v770 = vunpack.c.l.b16 %v495
        %v771 = vunpack.c.h.b16 %v495
        %v772 = vunpack.c.l.b16 %v496
        %v773 = vunpack.c.h.b16 %v496
        %v774 = vunpack.c.l.b16 %v497
        %v775 = vunpack.c.h.b16 %v497
        %v776 = vunpack.c.l.b16 %v498
        %v777 = vunpack.c.h.b16 %v498
        %v778 = vunpack.c.l.b16 %v499
        %v779 = vunpack.c.h.b16 %v499
        %v780 = vunpack.c.l.b16 %v500
        %v781 = vunpack.c.h.b16 %v500
        %v782 = vunpack.c.l.b16 %v501
        %v783 = vunpack.c.h.b16 %v501
        %v784 = vunpack.c.l.b16 %v502
        %v785 = vunpack.c.h.b16 %v502
        %v786 = vunpack.c.l.b16 %v503
        %v787 = vunpack.c.h.b16 %v503
        %v788 = vunpack.c.l.b16 %v504
        %v789 = vunpack.c.h.b16 %v504
        %v790 = vunpack.c.l.b16 %v505
        %v791 = vunpack.c.h.b16 %v505
        %v792 = vunpack.c.l.b16 %v506
        %v793 = vunpack.c.h.b16 %v506
        %v794 = vunpack.c.l.b16 %v507
        %v795 = vunpack.c.h.b16 %v507
        %v796 = vpack.c.b16 %v606, %v604
        %v797 = vpack.c.b16 %v607, %v605
        %v798 = vpack.c.b16 %v610, %v608
        %v799 = vpack.c.b16 %v611, %v609
        %v800 = vpack.c.b16 %v614, %v612
        %v801 = vpack.c.b16 %v615, %v613
        %v802 = vpack.c.b16 %v618, %v616
        %v803 = vpack.c.b16 %v619, %v617
        %v804 = vpack.c.b16 %v622, %v620
        %v805 = vpack.c.b16 %v623, %v621
        %v806 = vpack.c.b16 %v626, %v624
        %v807 = vpack.c.b16 %v627, %v625
        %v808 = vpack.c.b16 %v630, %v628
        %v809 = vpack.c.b16 %v631, %v629
        %v810 = vpack.c.b16 %v634, %v632
        %v811 = vpack.c.b16 %v635, %v633
        %v812 = vpack.c.b16 %v638, %v636
        %v813 = vpack.c.b16 %v639, %v637
        %v814 = vpack.c.b16 %v642, %v640
        %v815 = vpack.c.b16 %v643, %v641
        %v816 = vpack.c.b16 %v646, %v644
        %v817 = vpack.c.b16 %v647, %v645
        %v818 = vpack.c.b16 %v650, %v648
        %v819 = vpack.c.b16 %v651, %v649
        %v820 = vpack.c.b16 %v654, %v652
        %v821 = vpack.c.b16 %v655, %v653
        %v822 = vpack.c.b16 %v658, %v656
        %v823 = vpack.c.b16 %v659, %v657
        %v824 = vpack.c.b16 %v662, %v660
        %v825 = vpack.c.b16 %v663, %v661
        %v826 = vpack.c.b16 %v666, %v664
        %v827 = vpack.c.b16 %v667, %v665
        %v828 = vpack.c.b16 %v670, %v668
        %v829 = vpack.c.b16 %v671, %v669
        %v830 = vpack.c.b16 %v674, %v672
        %v831 = vpack.c.b16 %v675, %v673
        %v832 = vpack.c.b16 %v678, %v676
        %v833 = vpack.c.b16 %v679, %v677
        %v834 = vpack.c.b16 %v682, %v680
        %v835 = vpack.c.b16 %v683, %v681
        %v836 = vpack.c.b16 %v686, %v684
        %v837 = vpack.c.b16 %v687, %v685
        %v838 = vpack.c.b16 %v690, %v688
        %v839 = vpack.c.b16 %v691, %v689
        %v840 = vpack.c.b16 %v694, %v692
        %v841 = vpack.c.b16 %v695, %v693
        %v842 = vpack.c.b16 %v698, %v696
        %v843 = vpack.c.b16 %v699, %v697
        %v844 = vpack.c.b16 %v702, %v700
        %v845 = vpack.c.b16 %v703, %v701
        %v846 = vpack.c.b16 %v706, %v704
        %v847 = vpack.c.b16 %v707, %v705
        %v848 = vpack.c.b16 %v710, %v708
        %v849 = vpack.c.b16 %v711, %v709
        %v850 = vpack.c.b16 %v714, %v712
        %v851 = vpack.c.b16 %v715, %v713
        %v852 = vpack.c.b16 %v718, %v716
        %v853 = vpack.c.b16 %v719, %v717
        %v854 = vpack.c.b16 %v722, %v720
        %v855 = vpack.c.b16 %v723, %v721
        %v856 = vpack.c.b16 %v726, %v724
        %v857 = vpack.c.b16 %v727, %v725
        %v858 = vpack.c.b16 %v730, %v728
        %v859 = vpack.c.b16 %v731, %v729
        %v860 = vpack.c.b16 %v734, %v732
        %v861 = vpack.c.b16 %v735, %v733
        %v862 = vpack.c.b16 %v738, %v736
        %v863 = vpack.c.b16 %v739, %v737
        %v864 = vpack.c.b16 %v742, %v740
        %v865 = vpack.c.b16 %v743, %v741
        %v866 = vpack.c.b16 %v746, %v744
        %v867 = vpack.c.b16 %v747, %v745
        %v868 = vpack.c.b16 %v750, %v748
        %v869 = vpack.c.b16 %v751, %v749
        %v870 = vpack.c.b16 %v754, %v752
        %v871 = vpack.c.b16 %v755, %v753
        %v872 = vpack.c.b16 %v758, %v756
        %v873 = vpack.c.b16 %v759, %v757
        %v874 = vpack.c.b16 %v762, %v760
        %v875 = vpack.c.b16 %v763, %v761
        %v876 = vpack.c.b16 %v766, %v764
        %v877 = vpack.c.b16 %v767, %v765
        %v878 = vpack.c.b16 %v770, %v768
        %v879 = vpack.c.b16 %v771, %v769
        %v880 = vpack.c.b16 %v774, %v772
        %v881 = vpack.c.b16 %v775, %v773
        %v882 = vpack.c.b16 %v778, %v776
        %v883 = vpack.c.b16 %v779, %v777
        %v884 = vpack.c.b16 %v782, %v780
        %v885 = vpack.c.b16 %v783, %v781
        %v886 = vpack.c.b16 %v786, %v784
        %v887 = vpack.c.b16 %v787, %v785
        %v888 = vpack.c.b16 %v790, %v788
        %v889 = vpack.c.b16 %v791, %v789
        %v890 = vpack.c.b16 %v794, %v792
        %v891 = vpack.c.b16 %v795, %v793
        %988 = vmatprep.subr.bf16.mxu0 %v811
        %989 = vmatpush1.bf16.msra.mxu0 %v810
        %990 = vmatprep.subr.bf16.mxu0 %v809
        %991 = vmatpush1.bf16.msra.mxu0 %v808
        %992 = vmatprep.subr.bf16.mxu0 %v807
        %993 = vmatpush1.bf16.msra.mxu0 %v806
        %994 = vmatprep.subr.bf16.mxu0 %v805
        %995 = vmatpush1.bf16.msra.mxu0 %v804
        %996 = vmatprep.subr.bf16.mxu0 %v803
        %997 = vmatpush1.bf16.msra.mxu0 %v802
        %998 = vmatprep.subr.bf16.mxu0 %v801
        %999 = vmatpush1.bf16.msra.mxu0 %v800
        %1000 = vmatprep.subr.bf16.mxu0 %v799
        %1001 = vmatpush1.bf16.msra.mxu0 %v798
        %1002 = vmatprep.subr.bf16.mxu0 %v797
        %1003 = vmatpush1.bf16.msra.mxu0 %v796
        %1004 = vmatprep.subr.bf16.mxu0 %v827
        %1005 = vmatpush2.bf16.msra.mxu0 %v826
        %1006 = vmatprep.subr.bf16.mxu0 %v825
        %1007 = vmatpush2.bf16.msra.mxu0 %v824
        %1008 = vmatprep.subr.bf16.mxu0 %v823
        %1009 = vmatpush2.bf16.msra.mxu0 %v822
        %1010 = vmatprep.subr.bf16.mxu0 %v821
        %1011 = vmatpush2.bf16.msra.mxu0 %v820
        %1012 = vmatprep.subr.bf16.mxu0 %v819
        %1013 = vmatpush2.bf16.msra.mxu0 %v818
        %1014 = vmatprep.subr.bf16.mxu0 %v817
        %1015 = vmatpush2.bf16.msra.mxu0 %v816
        %1016 = vmatprep.subr.bf16.mxu0 %v815
        %1017 = vmatpush2.bf16.msra.mxu0 %v814
        %1018 = vmatprep.subr.bf16.mxu0 %v813
        %1019 = vmatpush2.bf16.msra.mxu0 %v812
        %1020 = vmatprep.mubr.bf16.mxu0 %v407
        %1021 = vmatmul.mubr.bf16.gmra.mxu0 %v406
        %v1022 = vpop.f32.mrf.mxu0
        %v1023 = vadd.f32 0.0, %v1022
        %v1024 = vpop.f32.mrf.mxu0
        %v1025 = vadd.f32 0.0, %v1024
        %v1026 = vpop.f32.mrf.mxu0
        %v1027 = vpop.f32.mrf.mxu0
        %1028 = vdwg.mxu0
        %1029 = vmatprep.subr.bf16.mxu0 %v843
        %1030 = vmatpush1.bf16.msra.mxu0 %v842
        %1031 = vmatprep.subr.bf16.mxu0 %v841
        %1032 = vmatpush1.bf16.msra.mxu0 %v840
        %1033 = vmatprep.subr.bf16.mxu0 %v839
        %1034 = vmatpush1.bf16.msra.mxu0 %v838
        %1035 = vmatprep.subr.bf16.mxu0 %v837
        %1036 = vmatpush1.bf16.msra.mxu0 %v836
        %1037 = vmatprep.subr.bf16.mxu0 %v835
        %1038 = vmatpush1.bf16.msra.mxu0 %v834
        %1039 = vmatprep.subr.bf16.mxu0 %v833
        %1040 = vmatpush1.bf16.msra.mxu0 %v832
        %1041 = vmatprep.subr.bf16.mxu0 %v831
        %1042 = vmatpush1.bf16.msra.mxu0 %v830
        %1043 = vmatprep.subr.bf16.mxu0 %v829
        %1044 = vmatpush1.bf16.msra.mxu0 %v828
        %1045 = vmatprep.subr.bf16.mxu0 %v859
        %1046 = vmatpush2.bf16.msra.mxu0 %v858
        %1047 = vmatprep.subr.bf16.mxu0 %v857
        %1048 = vmatpush2.bf16.msra.mxu0 %v856
        %1049 = vmatprep.subr.bf16.mxu0 %v855
        %1050 = vmatpush2.bf16.msra.mxu0 %v854
        %1051 = vmatprep.subr.bf16.mxu0 %v853
        %1052 = vmatpush2.bf16.msra.mxu0 %v852
        %1053 = vmatprep.subr.bf16.mxu0 %v851
        %1054 = vmatpush2.bf16.msra.mxu0 %v850
        %1055 = vmatprep.subr.bf16.mxu0 %v849
        %1056 = vmatpush2.bf16.msra.mxu0 %v848
        %1057 = vmatprep.subr.bf16.mxu0 %v847
        %1058 = vmatpush2.bf16.msra.mxu0 %v846
        %1059 = vmatprep.subr.bf16.mxu0 %v845
        %1060 = vmatpush2.bf16.msra.mxu0 %v844
        %1061 = vmatprep.mubr.bf16.mxu0 %v409
        %1062 = vmatmul.mubr.bf16.gmra.mxu0 %v408
        %v1063 = vpop.f32.mrf.mxu0
        %v1064 = vadd.f32 %v1023, %v1063
        %v1065 = vpop.f32.mrf.mxu0
        %v1066 = vadd.f32 %v1025, %v1065
        %v1067 = vpop.f32.mrf.mxu0
        %v1068 = vpop.f32.mrf.mxu0
        %1069 = vdwg.mxu0
        %1070 = vmatprep.subr.bf16.mxu0 %v875
        %1071 = vmatpush1.bf16.msra.mxu0 %v874
        %1072 = vmatprep.subr.bf16.mxu0 %v873
        %1073 = vmatpush1.bf16.msra.mxu0 %v872
        %1074 = vmatprep.subr.bf16.mxu0 %v871
        %1075 = vmatpush1.bf16.msra.mxu0 %v870
        %1076 = vmatprep.subr.bf16.mxu0 %v869
        %1077 = vmatpush1.bf16.msra.mxu0 %v868
        %1078 = vmatprep.subr.bf16.mxu0 %v867
        %1079 = vmatpush1.bf16.msra.mxu0 %v866
        %1080 = vmatprep.subr.bf16.mxu0 %v865
        %1081 = vmatpush1.bf16.msra.mxu0 %v864
        %1082 = vmatprep.subr.bf16.mxu0 %v863
        %1083 = vmatpush1.bf16.msra.mxu0 %v862
        %1084 = vmatprep.subr.bf16.mxu0 %v861
        %1085 = vmatpush1.bf16.msra.mxu0 %v860
        %1086 = vmatprep.subr.bf16.mxu0 %v891
        %1087 = vmatpush2.bf16.msra.mxu0 %v890
        %1088 = vmatprep.subr.bf16.mxu0 %v889
        %1089 = vmatpush2.bf16.msra.mxu0 %v888
        %1090 = vmatprep.subr.bf16.mxu0 %v887
        %1091 = vmatpush2.bf16.msra.mxu0 %v886
        %1092 = vmatprep.subr.bf16.mxu0 %v885
        %1093 = vmatpush2.bf16.msra.mxu0 %v884
        %1094 = vmatprep.subr.bf16.mxu0 %v883
        %1095 = vmatpush2.bf16.msra.mxu0 %v882
        %1096 = vmatprep.subr.bf16.mxu0 %v881
        %1097 = vmatpush2.bf16.msra.mxu0 %v880
        %1098 = vmatprep.subr.bf16.mxu0 %v879
        %1099 = vmatpush2.bf16.msra.mxu0 %v878
        %1100 = vmatprep.subr.bf16.mxu0 %v877
        %1101 = vmatpush2.bf16.msra.mxu0 %v876
        %1102 = vmatprep.mubr.bf16.mxu0 %v411
        %1103 = vmatmul.mubr.bf16.gmra.mxu0 %v410
        %v1104 = vpop.f32.mrf.mxu0
        %v1105 = vadd.f32 %v1064, %v1104
        %v1106 = vpop.f32.mrf.mxu0
        %v1107 = vadd.f32 %v1066, %v1106
        %v1108 = vpop.f32.mrf.mxu0
        %v1109 = vpop.f32.mrf.mxu0
        %1110 = vdwg.mxu0
        %v1116 = vunpack.c.l.b16 %v395
        %v1117 = vunpack.c.h.b16 %v395
        %v1118 = vunpack.c.l.b16 %v396
        %v1119 = vunpack.c.h.b16 %v396
        %v1120 = vunpack.c.l.b16 %v397
        %v1121 = vunpack.c.h.b16 %v397
        %v1122 = vunpack.c.l.b16 %v398
        %v1123 = vunpack.c.h.b16 %v398
        %v1124 = vunpack.c.l.b16 %v399
        %v1125 = vunpack.c.h.b16 %v399
        %v1126 = vpack.c.b16 %v1118, %v1116
        %v1127 = vpack.c.b16 %v1119, %v1117
        %v1128 = vpack.c.b16 %v1122, %v1120
        %v1129 = vpack.c.b16 %v1123, %v1121
        %v1130 = vpack.c.b16 %v1124, %v1124
        %v1131 = vpack.c.b16 %v1125, %v1125
        %vm1136 = vcmask 326656
        %v1138 = vsel %vm1136, %v394, 0
        %vm1140 = vcmask 1043456
        %v1142 = vsel %vm1140, %v1130, 0
        %v1145 = vsel %vm1140, %v1131, 0
        %1147 = vmatprep.subr.bf16.mxu0 0
        %1148 = vmatpush1.bf16.msra.mxu0 0
        %1149 = vmatprep.subr.bf16.mxu0 0
        %1150 = vmatpush1.bf16.msra.mxu0 0
        %1151 = vmatprep.subr.bf16.mxu0 0
        %1152 = vmatpush1.bf16.msra.mxu0 0
        %1153 = vmatprep.subr.bf16.mxu0 0
        %1154 = vmatpush1.bf16.msra.mxu0 0
        %1155 = vmatprep.subr.bf16.mxu0 0
        %1156 = vmatpush1.bf16.msra.mxu0 0
        %1157 = vmatprep.subr.bf16.mxu0 %v1145
        %1158 = vmatpush1.bf16.msra.mxu0 %v1142
        %1159 = vmatprep.subr.bf16.mxu0 %v1129
        %1160 = vmatpush1.bf16.msra.mxu0 %v1128
        %1161 = vmatprep.subr.bf16.mxu0 %v1127
        %1162 = vmatpush1.bf16.msra.mxu0 %v1126
        %1163 = vmatprep.subr.bf16.mxu0 0
        %1164 = vmatpush2.bf16.msra.mxu0 0
        %1165 = vmatprep.subr.bf16.mxu0 0
        %1166 = vmatpush2.bf16.msra.mxu0 0
        %1167 = vmatprep.subr.bf16.mxu0 0
        %1168 = vmatpush2.bf16.msra.mxu0 0
        %1169 = vmatprep.subr.bf16.mxu0 0
        %1170 = vmatpush2.bf16.msra.mxu0 0
        %1171 = vmatprep.subr.bf16.mxu0 0
        %1172 = vmatpush2.bf16.msra.mxu0 0
        %1173 = vmatprep.subr.bf16.mxu0 0
        %1174 = vmatpush2.bf16.msra.mxu0 0
        %1175 = vmatprep.subr.bf16.mxu0 0
        %1176 = vmatpush2.bf16.msra.mxu0 0
        %1177 = vmatprep.subr.bf16.mxu0 0
        %1178 = vmatpush2.bf16.msra.mxu0 0
        %1179 = vmatprep.mubr.bf16.mxu0 0
        %1180 = vmatmul.mubr.bf16.gmra.mxu0 %v1138
        %v1181 = vpop.f32.mrf.mxu0
        %v1182 = vadd.f32 %v1105, %v1181
        %v1183 = vpop.f32.mrf.mxu0
        %v1184 = vadd.f32 %v1107, %v1183
        %v1185 = vpop.f32.mrf.mxu0
        %v1186 = vpop.f32.mrf.mxu0
        %1187 = vdwg.mxu0
        %v1188 = vld [vmem:[%s4] sm:$0x3]
        %v1190 = vlaneseq
        %v1191 = vshrl.u32 %v1190, 7
        %v1192 = vsub.s32 0, %v1191
        %v1193 = vrot.slane %v1188, %v1192
        %v1194 = vlaneseq
        %v1195 = vshrl.u32 %v1194, 7
        %v1196 = vsub.s32 1, %v1195
        %v1197 = vrot.slane %v1188, %v1196
        %v1200 = vadd.f32 %v1182, %v1193
        %v1201 = vadd.f32 %v1184, %v1197
        %v1202 = vld [vmem:[#allocation6] sm:$0xff]
        %v1203 = vld [vmem:[#allocation6 + $0x8] sm:$0xff]
        %v1204 = vld [vmem:[#allocation6 + $0x10] sm:$0xff]
        %v1205 = vld [vmem:[#allocation6 + $0x18] sm:$0xff]
        %v1206 = vld [vmem:[#allocation6 + $0x20] sm:$0xff]
        %v1207 = vld [vmem:[#allocation6 + $0x28] sm:$0xff]
        %v1208 = vld [vmem:[#allocation6 + $0x30] sm:$0xff]
        %v1209 = vld [vmem:[#allocation6 + $0x38] sm:$0xff]
        %v1210 = vld [vmem:[#allocation6 + $0x40] sm:$0xff]
        %v1211 = vld [vmem:[#allocation6 + $0x48] sm:$0xff]
        %v1212 = vld [vmem:[#allocation6 + $0x50] sm:$0xff]
        %v1213 = vld [vmem:[#allocation6 + $0x58] sm:$0xff]
        %v1214 = vld [vmem:[#allocation6 + $0x60] sm:$0xff]
        %v1215 = vld [vmem:[#allocation6 + $0x68] sm:$0xff]
        %v1216 = vld [vmem:[#allocation6 + $0x70] sm:$0xff]
        %v1217 = vld [vmem:[#allocation6 + $0x78] sm:$0xff]
        %v1218 = vld [vmem:[#allocation6 + $0x80] sm:$0xff]
        %v1219 = vld [vmem:[#allocation6 + $0x88] sm:$0xff]
        %v1220 = vld [vmem:[#allocation6 + $0x90] sm:$0xff]
        %v1221 = vld [vmem:[#allocation6 + $0x98] sm:$0xff]
        %v1222 = vld [vmem:[#allocation6 + $0xa0] sm:$0xff]
        %v1223 = vld [vmem:[#allocation6 + $0xa8] sm:$0xff]
        %v1224 = vld [vmem:[#allocation6 + $0xb0] sm:$0xff]
        %v1225 = vld [vmem:[#allocation6 + $0xb8] sm:$0xff]
        %v1226 = vld [vmem:[#allocation6 + $0xc0] sm:$0xff]
        %v1227 = vld [vmem:[#allocation6 + $0xc8] sm:$0xff]
        %v1228 = vld [vmem:[#allocation6 + $0xd0] sm:$0xff]
        %v1229 = vld [vmem:[#allocation6 + $0xd8] sm:$0xff]
        %v1230 = vld [vmem:[#allocation6 + $0xe0] sm:$0xff]
        %v1231 = vld [vmem:[#allocation6 + $0xe8] sm:$0xff]
        %v1232 = vld [vmem:[#allocation6 + $0xf0] sm:$0xff]
        %v1233 = vld [vmem:[#allocation6 + $0xf8] sm:$0xff]
        %v1234 = vld [vmem:[%s6] sm:$0x1]
        %v1236 = vlaneseq
        %v1237 = vshrl.u32 %v1236, 7
        %v1238 = vsub.s32 0, %v1237
        %v1239 = vrot.slane %v1234, %v1238
        %1241 = vmatprep.subr.mxu0 0.0
        %1242 = vmatpush1.msra.mxu0 %v1217
        %1243 = vmatprep.subr.mxu0 0.0
        %1244 = vmatpush1.msra.mxu0 %v1216
        %1245 = vmatprep.subr.mxu0 0.0
        %1246 = vmatpush1.msra.mxu0 %v1215
        %1247 = vmatprep.subr.mxu0 0.0
        %1248 = vmatpush1.msra.mxu0 %v1214
        %1249 = vmatprep.subr.mxu0 0.0
        %1250 = vmatpush1.msra.mxu0 %v1213
        %1251 = vmatprep.subr.mxu0 0.0
        %1252 = vmatpush1.msra.mxu0 %v1212
        %1253 = vmatprep.subr.mxu0 0.0
        %1254 = vmatpush1.msra.mxu0 %v1211
        %1255 = vmatprep.subr.mxu0 0.0
        %1256 = vmatpush1.msra.mxu0 %v1210
        %1257 = vmatprep.subr.mxu0 0.0
        %1258 = vmatpush1.msra.mxu0 %v1209
        %1259 = vmatprep.subr.mxu0 0.0
        %1260 = vmatpush1.msra.mxu0 %v1208
        %1261 = vmatprep.subr.mxu0 0.0
        %1262 = vmatpush1.msra.mxu0 %v1207
        %1263 = vmatprep.subr.mxu0 0.0
        %1264 = vmatpush1.msra.mxu0 %v1206
        %1265 = vmatprep.subr.mxu0 0.0
        %1266 = vmatpush1.msra.mxu0 %v1205
        %1267 = vmatprep.subr.mxu0 0.0
        %1268 = vmatpush1.msra.mxu0 %v1204
        %1269 = vmatprep.subr.mxu0 0.0
        %1270 = vmatpush1.msra.mxu0 %v1203
        %1271 = vmatprep.subr.mxu0 0.0
        %1272 = vmatpush1.msra.mxu0 %v1202
        %1273 = vmatprep.subr.mxu0 0.0
        %1274 = vmatpush2.msra.mxu0 %v1233
        %1275 = vmatprep.subr.mxu0 0.0
        %1276 = vmatpush2.msra.mxu0 %v1232
        %1277 = vmatprep.subr.mxu0 0.0
        %1278 = vmatpush2.msra.mxu0 %v1231
        %1279 = vmatprep.subr.mxu0 0.0
        %1280 = vmatpush2.msra.mxu0 %v1230
        %1281 = vmatprep.subr.mxu0 0.0
        %1282 = vmatpush2.msra.mxu0 %v1229
        %1283 = vmatprep.subr.mxu0 0.0
        %1284 = vmatpush2.msra.mxu0 %v1228
        %1285 = vmatprep.subr.mxu0 0.0
        %1286 = vmatpush2.msra.mxu0 %v1227
        %1287 = vmatprep.subr.mxu0 0.0
        %1288 = vmatpush2.msra.mxu0 %v1226
        %1289 = vmatprep.subr.mxu0 0.0
        %1290 = vmatpush2.msra.mxu0 %v1225
        %1291 = vmatprep.subr.mxu0 0.0
        %1292 = vmatpush2.msra.mxu0 %v1224
        %1293 = vmatprep.subr.mxu0 0.0
        %1294 = vmatpush2.msra.mxu0 %v1223
        %1295 = vmatprep.subr.mxu0 0.0
        %1296 = vmatpush2.msra.mxu0 %v1222
        %1297 = vmatprep.subr.mxu0 0.0
        %1298 = vmatpush2.msra.mxu0 %v1221
        %1299 = vmatprep.subr.mxu0 0.0
        %1300 = vmatpush2.msra.mxu0 %v1220
        %1301 = vmatprep.subr.mxu0 0.0
        %1302 = vmatpush2.msra.mxu0 %v1219
        %1303 = vmatprep.subr.mxu0 0.0
        %1304 = vmatpush2.msra.mxu0 %v1218
        %1305 = vmatprep.mubr.f32.mxu0 %v1201
        %1306 = vmatmul.mubr.f32.gmra.mxu0 %v1200
        %v1307 = vpop.f32.mrf.mxu0
        %v1308 = vadd.f32 %v1239, %v1307
        %v1309 = vpop.f32.mrf.mxu0
        %1310 = vdwg.mxu0
        %v1311 = vmax.f32 %v1308, 0.0
        %v1312 = vld [vmem:[%s7] sm:$0xff]
        %v1313 = vld [vmem:[%s7 + $0x8] sm:$0xff]
        %v1314 = vld [vmem:[%s7 + $0x10] sm:$0xff]
        %v1315 = vld [vmem:[%s7 + $0x18] sm:$0xff]
        %v1316 = vld [vmem:[%s7 + $0x20] sm:$0xff]
        %v1317 = vld [vmem:[%s7 + $0x28] sm:$0xff]
        %v1318 = vld [vmem:[%s7 + $0x30] sm:$0xff]
        %v1319 = vld [vmem:[%s7 + $0x38] sm:$0xff]
        %v1320 = vld [vmem:[%s7 + $0x40] sm:$0xff]
        %v1321 = vld [vmem:[%s7 + $0x48] sm:$0xff]
        %v1322 = vld [vmem:[%s7 + $0x50] sm:$0xff]
        %v1323 = vld [vmem:[%s7 + $0x58] sm:$0xff]
        %v1324 = vld [vmem:[%s7 + $0x60] sm:$0xff]
        %v1325 = vld [vmem:[%s7 + $0x68] sm:$0xff]
        %v1326 = vld [vmem:[%s7 + $0x70] sm:$0xff]
        %v1327 = vld [vmem:[%s7 + $0x78] sm:$0xff]
        %v1328 = vld [vmem:[%s8] sm:$0x1]
        %v1330 = vlaneseq
        %v1331 = vshrl.u32 %v1330, 7
        %v1332 = vsub.s32 0, %v1331
        %v1333 = vrot.slane %v1328, %v1332
        %1335 = vmatprep.subr.mxu0 0.0
        %1336 = vmatpush1.msra.mxu0 %v1327
        %1337 = vmatprep.subr.mxu0 0.0
        %1338 = vmatpush1.msra.mxu0 %v1326
        %1339 = vmatprep.subr.mxu0 0.0
        %1340 = vmatpush1.msra.mxu0 %v1325
        %1341 = vmatprep.subr.mxu0 0.0
        %1342 = vmatpush1.msra.mxu0 %v1324
        %1343 = vmatprep.subr.mxu0 0.0
        %1344 = vmatpush1.msra.mxu0 %v1323
        %1345 = vmatprep.subr.mxu0 0.0
        %1346 = vmatpush1.msra.mxu0 %v1322
        %1347 = vmatprep.subr.mxu0 0.0
        %1348 = vmatpush1.msra.mxu0 %v1321
        %1349 = vmatprep.subr.mxu0 0.0
        %1350 = vmatpush1.msra.mxu0 %v1320
        %1351 = vmatprep.subr.mxu0 0.0
        %1352 = vmatpush1.msra.mxu0 %v1319
        %1353 = vmatprep.subr.mxu0 0.0
        %1354 = vmatpush1.msra.mxu0 %v1318
        %1355 = vmatprep.subr.mxu0 0.0
        %1356 = vmatpush1.msra.mxu0 %v1317
        %1357 = vmatprep.subr.mxu0 0.0
        %1358 = vmatpush1.msra.mxu0 %v1316
        %1359 = vmatprep.subr.mxu0 0.0
        %1360 = vmatpush1.msra.mxu0 %v1315
        %1361 = vmatprep.subr.mxu0 0.0
        %1362 = vmatpush1.msra.mxu0 %v1314
        %1363 = vmatprep.subr.mxu0 0.0
        %1364 = vmatpush1.msra.mxu0 %v1313
        %1365 = vmatprep.subr.mxu0 0.0
        %1366 = vmatpush1.msra.mxu0 %v1312
        %1367 = vmatprep.subr.mxu0 0.0
        %1368 = vmatpush2.msra.mxu0 0.0
        %1369 = vmatprep.subr.mxu0 0.0
        %1370 = vmatpush2.msra.mxu0 0.0
        %1371 = vmatprep.subr.mxu0 0.0
        %1372 = vmatpush2.msra.mxu0 0.0
        %1373 = vmatprep.subr.mxu0 0.0
        %1374 = vmatpush2.msra.mxu0 0.0
        %1375 = vmatprep.subr.mxu0 0.0
        %1376 = vmatpush2.msra.mxu0 0.0
        %1377 = vmatprep.subr.mxu0 0.0
        %1378 = vmatpush2.msra.mxu0 0.0
        %1379 = vmatprep.subr.mxu0 0.0
        %1380 = vmatpush2.msra.mxu0 0.0
        %1381 = vmatprep.subr.mxu0 0.0
        %1382 = vmatpush2.msra.mxu0 0.0
        %1383 = vmatprep.subr.mxu0 0.0
        %1384 = vmatpush2.msra.mxu0 0.0
        %1385 = vmatprep.subr.mxu0 0.0
        %1386 = vmatpush2.msra.mxu0 0.0
        %1387 = vmatprep.subr.mxu0 0.0
        %1388 = vmatpush2.msra.mxu0 0.0
        %1389 = vmatprep.subr.mxu0 0.0
        %1390 = vmatpush2.msra.mxu0 0.0
        %1391 = vmatprep.subr.mxu0 0.0
        %1392 = vmatpush2.msra.mxu0 0.0
        %1393 = vmatprep.subr.mxu0 0.0
        %1394 = vmatpush2.msra.mxu0 0.0
        %1395 = vmatprep.subr.mxu0 0.0
        %1396 = vmatpush2.msra.mxu0 0.0
        %1397 = vmatprep.subr.mxu0 0.0
        %1398 = vmatpush2.msra.mxu0 0.0
        %1399 = vmatprep.mubr.f32.mxu0 0.0
        %1400 = vmatmul.mubr.f32.gmra.mxu0 %v1311
        %v1401 = vpop.f32.mrf.mxu0
        %v1402 = vadd.f32 %v1333, %v1401
        %v1403 = vpop.f32.mrf.mxu0
        %1404 = vdwg.mxu0
        %v1405 = vxor.u32 %v1402, 2147483648
        %v1406 = vmul.f32 %v1405, 1.442695
        %v1407 = vpow.pop %v1406
        %v1408 = vadd.f32 %v1407, 1.0
        %v1409 = vrcp.pop %v1408
        %v1410 = vmul.f32 1.0, %v1409
        %v1411 = vmul.f32 %v1410, 10.0
        %vm1412 = vcmask 15360
        %1413 = vst.msk [vmem:[%s391] sm:$0xff] %vm1412, %v1411
        %p1414 = scmp.lt.s32.totalorder %s22, 1
        %s1415 = scalar_select %p1414, %s22, 1
        %s1416 = smul.addr %s1415, 8
        %s1417 = scalar_lea.vmem %s9, %s1416
        // Predicated region
        $region69: #{tpu_custom_call.1} parent=55 // pred_check
          %p1418 = pneg %p239
        $region70: #{tpu_custom_call.1} parent=55 // pred_check_branch
          %1420 = sbr.rel (%p1418) target = $region72
        $region71: #{tpu_custom_call.1} parent=55 // pred_region
          _
        $region72: #{tpu_custom_call.1} parent=55 // pred_fallthru
          _
      $region56: #{tpu_custom_call.1} parent=5 // pred_fallthru
        _
      %p1421 = scmp.le.s32.totalorder 2, %s17
      // Predicated region
      $region73: #{tpu_custom_call.1} parent=5 // pred_check
        %p1422 = pneg %p1421
      $region74: #{tpu_custom_call.1} parent=5 // pred_check_branch
        %1424 = sbr.rel (%p1422) target = $region76
      $region75: #{tpu_custom_call.1} parent=5 // pred_region
        %s1425 = ssub.s32 %s17, 2
        // Predicated region
        $region77: #{tpu_custom_call.1} parent=75 // pred_check
          %p1426 = pneg %p245
        $region78: #{tpu_custom_call.1} parent=75 // pred_check_branch
          %1428 = sbr.rel (%p1426) target = $region80
        $region79: #{tpu_custom_call.1} parent=75 // pred_region
          %p1429 = scmp.lt.s32.totalorder %s23, 1
          %s1430 = scalar_select %p1429, %s23, 1
          %s1431 = smul.addr %s1430, 8
          %s1432 = scalar_lea.vmem %s9, %s1431
        $region80: #{tpu_custom_call.1} parent=75 // pred_fallthru
          _
      $region76: #{tpu_custom_call.1} parent=5 // pred_fallthru
        _
    $region6: #{tpu_custom_call.1} parent=1 // loop_footer
      %s21 = sadd.s32 1, %s17
    $region7: #{tpu_custom_call.1} parent=1 // loop_footer_branch
      %16 = sbr.rel target = $region3
    $region8: #{tpu_custom_call.1} parent=1 // loop_exit
      _
    %1433 = vsyncpa [#allocation3], 1
    %s1434 = scalar_lea.sflag [#allocation3], 1
    %1435 = vsyncpa %s1434, 1
    %1436 = vsyncpa [#allocation5], 1

</llo_original>
